<compile_context>
chip_gen: v6e
topology: v6e:2x2x1
jax: 0.10.0
libtpu: 0.0.40
codegen_flags: <defaults>
</compile_context>

<pallas_src>
import jax
import jax.numpy as jnp
from jax.experimental import pallas as pl
from jax.experimental.pallas import tpu as pltpu


def _make_concat_kernel(n_past, n_future):
    """Kernel: copy T = n_past + n_future frame tiles into the two outputs."""
    T = n_past + n_future

    def kernel(*refs):
        in_refs = refs[:T]            # T tiles of shape (bB, cL)
        past_ref = refs[T]            # (bB, n_past,   cL)
        fut_ref = refs[T + 1]         # (bB, n_future, cL)
        for t in range(n_past):
            past_ref[:, pl.ds(t, 1), :] = in_refs[t][...][:, None, :]
        for j in range(n_future):
            fut_ref[:, pl.ds(j, 1), :] = in_refs[n_past + j][...][:, None, :]

    return kernel


def _choose_blocks(B, T, DHW, itemsize, vmem_budget=16 * 1024 * 1024):
    """Pick (batch_block, lane_block) so that per-step double-buffered VMEM
    stays under `vmem_budget`, stores stay lane-dense (lane block multiple of
    128 or the full lane dim), and the grid keeps >= 2 steps when possible
    (so both v7x TensorCores get work)."""
    # Batch block must equal B or be a multiple of 8 (sublane tiling rule).
    b_cands = sorted({B} | {b for b in range(8, B, 8) if B % b == 0},
                     reverse=True)
    # Lane block must divide DHW and be a multiple of 128 (or be DHW itself).
    if DHW % 128 == 0:
        l_cands = sorted({c for c in range(128, DHW + 1, 128) if DHW % c == 0},
                         reverse=True)
    else:
        l_cands = [DHW]

    def vmem_bytes(bb, cl):
        # T input tiles + (n_past + n_future)=T output rows, double-buffered.
        return 4 * T * bb * cl * itemsize

    best = None
    for bb in b_cands:
        for cl in l_cands:
            if vmem_bytes(bb, cl) <= vmem_budget:
                if best is None or bb * cl > best[0] * best[1]:
                    best = (bb, cl)
    if best is None:                  # pathological: fall back to smallest tiles
        return b_cands[-1], l_cands[-1]

    bb, cl = best
    steps = (B // bb) * (DHW // cl)
    if steps < 2:
        # Give both v7x TensorCores a grid step: prefer splitting the lane axis
        # (keeps stores lane-dense), else split the batch.
        if len(l_cands) > 1:
            cl = l_cands[1]
        elif len(b_cands) > 1:
            bb = b_cands[1]
    return bb, cl


def concat_past_future(frames, n_future):
    """frames: list of T arrays [B, D, H, W].

    Returns (past, future) equal to
      torch.cat(frames[:T-n_future], dim=1), torch.cat(frames[T-n_future:], dim=1)
    i.e. shapes [B, (T-n_future)*D, H, W] and [B, n_future*D, H, W].
    """
    T = len(frames)
    n_past = T - n_future
    assert n_past >= 1 and n_future >= 1, "need at least one past and one future frame"

    B, D, H, W = frames[0].shape
    DHW = D * H * W
    dtype = frames[0].dtype
    itemsize = jnp.dtype(dtype).itemsize

    # Free (contiguous) reshapes; no stacking copy of all frames.
    flat = [f.reshape(B, DHW) for f in frames]

    bb, cl = _choose_blocks(B, T, DHW, itemsize)
    grid = (B // bb, DHW // cl)

    kernel = _make_concat_kernel(n_past, n_future)

    in_specs = [pl.BlockSpec((bb, cl), lambda b, l: (b, l)) for _ in range(T)]
    out_specs = (
        pl.BlockSpec((bb, n_past, cl), lambda b, l: (b, 0, l)),
        pl.BlockSpec((bb, n_future, cl), lambda b, l: (b, 0, l)),
    )
    out_shape = (
        jax.ShapeDtypeStruct((B, n_past, DHW), dtype),
        jax.ShapeDtypeStruct((B, n_future, DHW), dtype),
    )

    past_flat, fut_flat = pl.pallas_call(
        kernel,
        grid=grid,
        in_specs=in_specs,
        out_specs=out_specs,
        out_shape=out_shape,
        compiler_params=pltpu.CompilerParams(
            dimension_semantics=("parallel", "parallel")
        ),
        cost_estimate=pl.CostEstimate(
            flops=0,
            transcendentals=0,
            bytes_accessed=2 * T * B * DHW * itemsize,
        ),
    )(*flat)

    # Row-major reshape [B, count, D*H*W] -> [B, count*D, H, W] is free and
    # exactly matches channel-wise concatenation.
    past = past_flat.reshape(B, n_past * D, H, W)
    future = fut_flat.reshape(B, n_future * D, H, W)
    return past, future


class BasePredictorPallas:
    """JAX/Pallas port of BasePredictor (no parameters in __init__)."""

    list_key = {'0': 'low', '1': 'medium', '2': 'high', '3': 'huge'}

    def concatenate_by_depth(self, inputs, target):
        lengt = len(target)
        past_feats = {}
        future_feats = {}
        for feature_level in range(len(inputs)):
            key = self.list_key[str(feature_level)]
            features = inputs[key]        # list of T arrays [B, D, H, W]
            past, future = concat_past_future(features, lengt)
            past_feats[key] = past
            future_feats[key] = future
        return past_feats, future_feats

    def forward(self, inputs, targets, return_loss=True):
        past, future = self.concatenate_by_depth(inputs, targets)
        # TODO(synk): forward_train / forward_test are abstract in BasePredictor;
        # return the concatenated past/future features produced by the kernel.
        return past, future


if __name__ == "__main__":
    key = jax.random.PRNGKey(0)
    B, D, T = 2, 8, 5          # batch, per-frame depth, number of frames
    n_future = 2               # len(targets)
    spatial = {'low': 16, 'medium': 8, 'high': 8, 'huge': 8}

    inputs = {}
    for lvl_name, hw in spatial.items():
        frames = []
        for t in range(T):
            key, sub = jax.random.split(key)
            frames.append(jax.random.normal(sub, (B, D, hw, hw), dtype=jnp.float32))
        inputs[lvl_name] = frames
    targets = [None] * n_future   # only len(targets) matters for the split

    model = BasePredictorPallas()
    past, future = model.forward(inputs, targets, return_loss=False)
    jax.block_until_ready(past)
    jax.block_until_ready(future)

    # Reference check: plain channel-wise concatenation.
    ok = True
    for lvl_name in spatial:
        frames = inputs[lvl_name]
        ref_past = jnp.concatenate(frames[: T - n_future], axis=1)
        ref_future = jnp.concatenate(frames[T - n_future:], axis=1)
        ok &= bool(jnp.array_equal(past[lvl_name], ref_past))
        ok &= bool(jnp.array_equal(future[lvl_name], ref_future))
        ok &= past[lvl_name].shape == (B, (T - n_future) * D, spatial[lvl_name], spatial[lvl_name])
        ok &= future[lvl_name].shape == (B, n_future * D, spatial[lvl_name], spatial[lvl_name])

    if ok:
        print("KERNEL_OK")
    else:
        raise SystemExit("mismatch vs reference")
</pallas_src>

<mosaic_0001>
module attributes {stable_mosaic.version = 11 : i64} {
  func.func @kernel(%arg0: i32, %arg1: i32, %arg2: memref<2x1024xf32, #tpu.memory_space<vmem>>, %arg3: memref<2x1024xf32, #tpu.memory_space<vmem>>, %arg4: memref<2x1024xf32, #tpu.memory_space<vmem>>, %arg5: memref<2x1024xf32, #tpu.memory_space<vmem>>, %arg6: memref<2x1024xf32, #tpu.memory_space<vmem>>, %arg7: memref<2x3x1024xf32, #tpu.memory_space<vmem>>, %arg8: memref<2x2x1024xf32, #tpu.memory_space<vmem>>) attributes {dimension_semantics = [#tpu.dimension_semantics<parallel>, #tpu.dimension_semantics<parallel>], iteration_bounds = array<i64: 1, 2>, scalar_prefetch = 0 : i64, scratch_operands = 0 : i64, tpu.core_type = #tpu.core_type<tc>, window_params = [{transform_indices = @transform_0, window_bounds = array<i64: 2, 1024>}, {transform_indices = @transform_1, window_bounds = array<i64: 2, 1024>}, {transform_indices = @transform_2, window_bounds = array<i64: 2, 1024>}, {transform_indices = @transform_3, window_bounds = array<i64: 2, 1024>}, {transform_indices = @transform_4, window_bounds = array<i64: 2, 1024>}, {transform_indices = @transform_5, window_bounds = array<i64: 2, 3, 1024>}, {transform_indices = @transform_6, window_bounds = array<i64: 2, 2, 1024>}]} {
    %c0 = arith.constant 0 : index
    %c0_0 = arith.constant 0 : index
    %0 = vector.load %arg2[%c0, %c0_0] : memref<2x1024xf32, #tpu.memory_space<vmem>>, vector<2x1024xf32>
    %1 = vector.shape_cast %0 : vector<2x1024xf32> to vector<2x1x1024xf32>
    %c0_1 = arith.constant 0 : index
    %c0_2 = arith.constant 0 : index
    %c0_3 = arith.constant 0 : index
    %2 = vector.load %arg7[%c0_1, %c0_2, %c0_3] : memref<2x3x1024xf32, #tpu.memory_space<vmem>>, vector<2x1x1024xf32>
    tpu.vector_store %arg7[%c0_1, %c0_2, %c0_3], %1 {strides = array<i32>} : memref<2x3x1024xf32, #tpu.memory_space<vmem>>, vector<2x1x1024xf32>,
    %c0_4 = arith.constant 0 : index
    %c0_5 = arith.constant 0 : index
    %3 = vector.load %arg3[%c0_4, %c0_5] : memref<2x1024xf32, #tpu.memory_space<vmem>>, vector<2x1024xf32>
    %4 = vector.shape_cast %3 : vector<2x1024xf32> to vector<2x1x1024xf32>
    %c0_6 = arith.constant 0 : index
    %c1 = arith.constant 1 : index
    %c0_7 = arith.constant 0 : index
    %5 = vector.load %arg7[%c0_6, %c1, %c0_7] : memref<2x3x1024xf32, #tpu.memory_space<vmem>>, vector<2x1x1024xf32>
    tpu.vector_store %arg7[%c0_6, %c1, %c0_7], %4 {strides = array<i32>} : memref<2x3x1024xf32, #tpu.memory_space<vmem>>, vector<2x1x1024xf32>,
    %c0_8 = arith.constant 0 : index
    %c0_9 = arith.constant 0 : index
    %6 = vector.load %arg4[%c0_8, %c0_9] : memref<2x1024xf32, #tpu.memory_space<vmem>>, vector<2x1024xf32>
    %7 = vector.shape_cast %6 : vector<2x1024xf32> to vector<2x1x1024xf32>
    %c0_10 = arith.constant 0 : index
    %c2 = arith.constant 2 : index
    %c0_11 = arith.constant 0 : index
    %8 = vector.load %arg7[%c0_10, %c2, %c0_11] : memref<2x3x1024xf32, #tpu.memory_space<vmem>>, vector<2x1x1024xf32>
    tpu.vector_store %arg7[%c0_10, %c2, %c0_11], %7 {strides = array<i32>} : memref<2x3x1024xf32, #tpu.memory_space<vmem>>, vector<2x1x1024xf32>,
    %c0_12 = arith.constant 0 : index
    %c0_13 = arith.constant 0 : index
    %9 = vector.load %arg5[%c0_12, %c0_13] : memref<2x1024xf32, #tpu.memory_space<vmem>>, vector<2x1024xf32>
    %10 = vector.shape_cast %9 : vector<2x1024xf32> to vector<2x1x1024xf32>
    %c0_14 = arith.constant 0 : index
    %c0_15 = arith.constant 0 : index
    %c0_16 = arith.constant 0 : index
    %11 = vector.load %arg8[%c0_14, %c0_15, %c0_16] : memref<2x2x1024xf32, #tpu.memory_space<vmem>>, vector<2x1x1024xf32>
    tpu.vector_store %arg8[%c0_14, %c0_15, %c0_16], %10 {strides = array<i32>} : memref<2x2x1024xf32, #tpu.memory_space<vmem>>, vector<2x1x1024xf32>,
    %c0_17 = arith.constant 0 : index
    %c0_18 = arith.constant 0 : index
    %12 = vector.load %arg6[%c0_17, %c0_18] : memref<2x1024xf32, #tpu.memory_space<vmem>>, vector<2x1024xf32>
    %13 = vector.shape_cast %12 : vector<2x1024xf32> to vector<2x1x1024xf32>
    %c0_19 = arith.constant 0 : index
    %c1_20 = arith.constant 1 : index
    %c0_21 = arith.constant 0 : index
    %14 = vector.load %arg8[%c0_19, %c1_20, %c0_21] : memref<2x2x1024xf32, #tpu.memory_space<vmem>>, vector<2x1x1024xf32>
    tpu.vector_store %arg8[%c0_19, %c1_20, %c0_21], %13 {strides = array<i32>} : memref<2x2x1024xf32, #tpu.memory_space<vmem>>, vector<2x1x1024xf32>,
    return
  }
  func.func @transform_0(%arg0: i32, %arg1: i32) -> (i32, i32) {
    %c0_i32 = arith.constant 0 : i32
    return %arg0, %arg1 : i32, i32
  }
  func.func @transform_1(%arg0: i32, %arg1: i32) -> (i32, i32) {
    %c0_i32 = arith.constant 0 : i32
    return %arg0, %arg1 : i32, i32
  }
  func.func @transform_2(%arg0: i32, %arg1: i32) -> (i32, i32) {
    %c0_i32 = arith.constant 0 : i32
    return %arg0, %arg1 : i32, i32
  }
  func.func @transform_3(%arg0: i32, %arg1: i32) -> (i32, i32) {
    %c0_i32 = arith.constant 0 : i32
    return %arg0, %arg1 : i32, i32
  }
  func.func @transform_4(%arg0: i32, %arg1: i32) -> (i32, i32) {
    %c0_i32 = arith.constant 0 : i32
    return %arg0, %arg1 : i32, i32
  }
  func.func @transform_5(%arg0: i32, %arg1: i32) -> (i32, i32, i32) {
    %c0_i32 = arith.constant 0 : i32
    %c0_i32_0 = arith.constant 0 : i32
    return %arg0, %c0_i32, %arg1 : i32, i32, i32
  }
  func.func @transform_6(%arg0: i32, %arg1: i32) -> (i32, i32, i32) {
    %c0_i32 = arith.constant 0 : i32
    %c0_i32_0 = arith.constant 0 : i32
    return %arg0, %c0_i32, %arg1 : i32, i32, i32
  }
}

</mosaic_0001>

<llo_original>
// kernel: tpu_custom_call.1
$region0: #{tpu_custom_call.1}
  #allocation0 [shape = 'u32[]', space=smem, size = 0x4, offset = 0x4, fixed_abs, tag = 'smem constant byte address 0x4 - core index']
  #allocation1 [shape = 'u32[144,128]{1,0:T(1,128)}', space=vmem, size = 0x12000, scoped, tag = 'internal scratch']
  %s0 = inlined_call_operand.hbm [shape: f32[2,2048], index: 0, kind: input, shape index: {}]
  %s1 = inlined_call_operand.hbm [shape: f32[2,2048], index: 1, kind: input, shape index: {}]
  %s2 = inlined_call_operand.hbm [shape: f32[2,2048], index: 2, kind: input, shape index: {}]
  %s3 = inlined_call_operand.hbm [shape: f32[2,2048], index: 3, kind: input, shape index: {}]
  %s4 = inlined_call_operand.hbm [shape: f32[2,2048], index: 4, kind: input, shape index: {}]
  %s5 = inlined_call_operand.vmem [shape: f32[2,3,2048], index: 5, kind: output, shape index: {0}]
  %s6 = inlined_call_operand.hbm [shape: f32[2,2,2048], index: 6, kind: output, shape index: {1}]
  %7 = xla_tuple %s5, %s6
  %s8 = sld [smem:[#allocation0]]
  $region100: #{tpu_custom_call.1} parent=0
    _
  %s10 = ssub.s32 1, %s8
  %s11 = scalar_select 0, %s10, %s8
  $region1: #{tpu_custom_call.1} parent=0
    #allocation2 [shape = 'u8[16384]{0}', space=vmem, size = 0x4000, scoped, tag = 'input window, operand 0']
    #allocation3 [shape = 's32[2]{0}', space=sflag, size = 0x8, scoped, tag = 'scoped memory for tpu_custom_call.1']
    #allocation4 [shape = 's32[2]{0}', space=sflag, size = 0x8, scoped, tag = 'scoped memory for tpu_custom_call.1']
    #allocation5 [shape = 'u8[16384]{0}', space=vmem, size = 0x4000, scoped, tag = 'input window, operand 1']
    #allocation6 [shape = 's32[2]{0}', space=sflag, size = 0x8, scoped, tag = 'scoped memory for tpu_custom_call.1']
    #allocation7 [shape = 'u8[16384]{0}', space=vmem, size = 0x4000, scoped, tag = 'input window, operand 2']
    #allocation8 [shape = 'u8[16384]{0}', space=vmem, size = 0x4000, scoped, tag = 'input window, operand 3']
    #allocation9 [shape = 's32[2]{0}', space=sflag, size = 0x8, scoped, tag = 'scoped memory for tpu_custom_call.1']
    #allocation10 [shape = 'u8[16384]{0}', space=vmem, size = 0x4000, scoped, tag = 'input window, operand 4']
    #allocation11 [shape = 'u8[65536]{0}', space=vmem, size = 0x10000, scoped, tag = 'output window, operand 0']
    #allocation12 [shape = 'u8[32768]{0}', space=vmem, size = 0x8000, scoped, tag = 'output window, operand 1']
    %12 = vsyncpa [#allocation3], 0
    %s13 = scalar_lea.sflag [#allocation3], 1
    %14 = vsyncpa %s13, 0
    %15 = vsyncpa [#allocation6], 0
    %s16 = scalar_lea.sflag [#allocation6], 1
    %17 = vsyncpa %s16, 0
    %18 = vsyncpa [#allocation9], 0
    %s19 = scalar_lea.sflag [#allocation9], 1
    %20 = vsyncpa %s19, 0
    %21 = vsyncpa [#allocation4], 0
    %s22 = scalar_lea.sflag [#allocation4], 1
    %23 = vsyncpa %s22, 0
    loop: start=0, step=1, limit=4
    $region2: #{tpu_custom_call.1} parent=1 // loop_pre_header
      _
    $region3: #{tpu_custom_call.1} parent=1 // loop_header
      %s25 = sphi 0, %s29
      %p26 = scmp.ge.s32.totalorder %s25, 4
      %s32 = sphi 0, %s44
      %s33 = sphi 0, %s40
      %s34 = sphi 0, %s32
      %s35 = sphi 0, %s33
      %s36 = sphi 0, %s34
      %s37 = sphi 0, %s35
      %s49 = sphi 0, %s51
      %s52 = sphi 0, %s49
      %s53 = sphi 0, %s52
      %s69 = sphi 0, %s53
      %s77 = sphi 0, %s79
      %s80 = sphi 0, %s77
      %s81 = sphi 0, %s80
      %s97 = sphi 0, %s81
      %s105 = sphi 0, %s107
      %s108 = sphi 0, %s105
      %s109 = sphi 0, %s108
      %s125 = sphi 0, %s109
      %s133 = sphi 0, %s135
      %s136 = sphi 0, %s133
      %s137 = sphi 0, %s136
      %s153 = sphi 0, %s137
      %s161 = sphi 0, %s163
      %s164 = sphi 0, %s161
      %s165 = sphi 0, %s164
      %s181 = sphi 0, %s165
      %s189 = sphi 0, %s191
      %s192 = sphi 0, %s189
      %s193 = sphi 0, %s192
      %s209 = sphi 0, %s193
      %s217 = sphi 0, %s219
      %s220 = sphi 0, %s217
      %s221 = sphi 0, %s220
      %s237 = sphi 0, %s221
    $region4: #{tpu_custom_call.1} parent=1 // loop_header_branch
      %28 = sbr.rel (%p26) target = $region8
    $region5: #{tpu_custom_call.1} parent=1 // loop_body
      %s30 = ssub.s32 %s25, 1
      %s31 = ssub.s32 %s25, 2
      %s38 = sadd.s32 1, %s33
      %p39 = scmp.ge.s32.totalorder %s38, 2
      %s40 = scalar_select %p39, 0, %s38
      %s41 = sadd.s32 1, %s32
      %s42 = scalar_select %p39, %s41, %s32
      %p43 = scmp.ge.s32.totalorder %s42, 1
      %s44 = scalar_select %p43, 0, %s42
      %s45 = ssub.s32 %s32, %s44
      %s46 = ssub.s32 %s33, %s40
      %s47 = sor.u32 %s45, %s46
      %p48 = scmp.eq.s32.totalorder %s47, 0
      %s50 = sadd.s32 %s49, 1
      %s51 = scalar_select %p48, %s49, %s50
      %p54 = pneg %p48
      %p55 = scmp.eq.s32.totalorder %s25, 1
      %p56 = por %p54, %p55
      %p57 = scmp.ne.s32.totalorder %s49, %s52
      %p58 = scmp.eq.s32.totalorder %s25, 0
      %p59 = por %p57, %p58
      %p60 = scmp.ne.s32.totalorder %s49, %s52
      %p61 = scmp.eq.s32.totalorder %s30, 1
      %p62 = por %p60, %p61
      %p63 = scmp.ne.s32.totalorder %s52, %s53
      %p64 = scmp.eq.s32.totalorder %s30, 0
      %p65 = por %p63, %p64
      %p66 = scmp.ne.s32.totalorder %s52, %s53
      %p67 = scmp.eq.s32.totalorder %s31, 1
      %p68 = por %p66, %p67
      %p70 = scmp.ne.s32.totalorder %s53, %s69
      %p71 = scmp.eq.s32.totalorder %s31, 0
      %p72 = por %p70, %p71
      %s73 = ssub.s32 %s32, %s44
      %s74 = ssub.s32 %s33, %s40
      %s75 = sor.u32 %s73, %s74
      %p76 = scmp.eq.s32.totalorder %s75, 0
      %s78 = sadd.s32 %s77, 1
      %s79 = scalar_select %p76, %s77, %s78
      %p82 = pneg %p76
      %p83 = scmp.eq.s32.totalorder %s25, 1
      %p84 = por %p82, %p83
      %p85 = scmp.ne.s32.totalorder %s77, %s80
      %p86 = scmp.eq.s32.totalorder %s25, 0
      %p87 = por %p85, %p86
      %p88 = scmp.ne.s32.totalorder %s77, %s80
      %p89 = scmp.eq.s32.totalorder %s30, 1
      %p90 = por %p88, %p89
      %p91 = scmp.ne.s32.totalorder %s80, %s81
      %p92 = scmp.eq.s32.totalorder %s30, 0
      %p93 = por %p91, %p92
      %p94 = scmp.ne.s32.totalorder %s80, %s81
      %p95 = scmp.eq.s32.totalorder %s31, 1
      %p96 = por %p94, %p95
      %p98 = scmp.ne.s32.totalorder %s81, %s97
      %p99 = scmp.eq.s32.totalorder %s31, 0
      %p100 = por %p98, %p99
      %s101 = ssub.s32 %s32, %s44
      %s102 = ssub.s32 %s33, %s40
      %s103 = sor.u32 %s101, %s102
      %p104 = scmp.eq.s32.totalorder %s103, 0
      %s106 = sadd.s32 %s105, 1
      %s107 = scalar_select %p104, %s105, %s106
      %p110 = pneg %p104
      %p111 = scmp.eq.s32.totalorder %s25, 1
      %p112 = por %p110, %p111
      %p113 = scmp.ne.s32.totalorder %s105, %s108
      %p114 = scmp.eq.s32.totalorder %s25, 0
      %p115 = por %p113, %p114
      %p116 = scmp.ne.s32.totalorder %s105, %s108
      %p117 = scmp.eq.s32.totalorder %s30, 1
      %p118 = por %p116, %p117
      %p119 = scmp.ne.s32.totalorder %s108, %s109
      %p120 = scmp.eq.s32.totalorder %s30, 0
      %p121 = por %p119, %p120
      %p122 = scmp.ne.s32.totalorder %s108, %s109
      %p123 = scmp.eq.s32.totalorder %s31, 1
      %p124 = por %p122, %p123
      %p126 = scmp.ne.s32.totalorder %s109, %s125
      %p127 = scmp.eq.s32.totalorder %s31, 0
      %p128 = por %p126, %p127
      %s129 = ssub.s32 %s32, %s44
      %s130 = ssub.s32 %s33, %s40
      %s131 = sor.u32 %s129, %s130
      %p132 = scmp.eq.s32.totalorder %s131, 0
      %s134 = sadd.s32 %s133, 1
      %s135 = scalar_select %p132, %s133, %s134
      %p138 = pneg %p132
      %p139 = scmp.eq.s32.totalorder %s25, 1
      %p140 = por %p138, %p139
      %p141 = scmp.ne.s32.totalorder %s133, %s136
      %p142 = scmp.eq.s32.totalorder %s25, 0
      %p143 = por %p141, %p142
      %p144 = scmp.ne.s32.totalorder %s133, %s136
      %p145 = scmp.eq.s32.totalorder %s30, 1
      %p146 = por %p144, %p145
      %p147 = scmp.ne.s32.totalorder %s136, %s137
      %p148 = scmp.eq.s32.totalorder %s30, 0
      %p149 = por %p147, %p148
      %p150 = scmp.ne.s32.totalorder %s136, %s137
      %p151 = scmp.eq.s32.totalorder %s31, 1
      %p152 = por %p150, %p151
      %p154 = scmp.ne.s32.totalorder %s137, %s153
      %p155 = scmp.eq.s32.totalorder %s31, 0
      %p156 = por %p154, %p155
      %s157 = ssub.s32 %s32, %s44
      %s158 = ssub.s32 %s33, %s40
      %s159 = sor.u32 %s157, %s158
      %p160 = scmp.eq.s32.totalorder %s159, 0
      %s162 = sadd.s32 %s161, 1
      %s163 = scalar_select %p160, %s161, %s162
      %p166 = pneg %p160
      %p167 = scmp.eq.s32.totalorder %s25, 1
      %p168 = por %p166, %p167
      %p169 = scmp.ne.s32.totalorder %s161, %s164
      %p170 = scmp.eq.s32.totalorder %s25, 0
      %p171 = por %p169, %p170
      %p172 = scmp.ne.s32.totalorder %s161, %s164
      %p173 = scmp.eq.s32.totalorder %s30, 1
      %p174 = por %p172, %p173
      %p175 = scmp.ne.s32.totalorder %s164, %s165
      %p176 = scmp.eq.s32.totalorder %s30, 0
      %p177 = por %p175, %p176
      %p178 = scmp.ne.s32.totalorder %s164, %s165
      %p179 = scmp.eq.s32.totalorder %s31, 1
      %p180 = por %p178, %p179
      %p182 = scmp.ne.s32.totalorder %s165, %s181
      %p183 = scmp.eq.s32.totalorder %s31, 0
      %p184 = por %p182, %p183
      %s185 = ssub.s32 %s32, %s44
      %s186 = ssub.s32 %s33, %s40
      %s187 = sor.u32 %s185, %s186
      %p188 = scmp.eq.s32.totalorder %s187, 0
      %s190 = sadd.s32 %s189, 1
      %s191 = scalar_select %p188, %s189, %s190
      %p194 = pneg %p188
      %p195 = scmp.eq.s32.totalorder %s25, 1
      %p196 = por %p194, %p195
      %p197 = scmp.ne.s32.totalorder %s189, %s192
      %p198 = scmp.eq.s32.totalorder %s25, 0
      %p199 = por %p197, %p198
      %p200 = scmp.ne.s32.totalorder %s189, %s192
      %p201 = scmp.eq.s32.totalorder %s30, 1
      %p202 = por %p200, %p201
      %p203 = scmp.ne.s32.totalorder %s192, %s193
      %p204 = scmp.eq.s32.totalorder %s30, 0
      %p205 = por %p203, %p204
      %p206 = scmp.ne.s32.totalorder %s192, %s193
      %p207 = scmp.eq.s32.totalorder %s31, 1
      %p208 = por %p206, %p207
      %p210 = scmp.ne.s32.totalorder %s193, %s209
      %p211 = scmp.eq.s32.totalorder %s31, 0
      %p212 = por %p210, %p211
      %s213 = ssub.s32 %s32, %s44
      %s214 = ssub.s32 %s33, %s40
      %s215 = sor.u32 %s213, %s214
      %p216 = scmp.eq.s32.totalorder %s215, 0
      %s218 = sadd.s32 %s217, 1
      %s219 = scalar_select %p216, %s217, %s218
      %p222 = pneg %p216
      %p223 = scmp.eq.s32.totalorder %s25, 1
      %p224 = por %p222, %p223
      %p225 = scmp.ne.s32.totalorder %s217, %s220
      %p226 = scmp.eq.s32.totalorder %s25, 0
      %p227 = por %p225, %p226
      %p228 = scmp.ne.s32.totalorder %s217, %s220
      %p229 = scmp.eq.s32.totalorder %s30, 1
      %p230 = por %p228, %p229
      %p231 = scmp.ne.s32.totalorder %s220, %s221
      %p232 = scmp.eq.s32.totalorder %s30, 0
      %p233 = por %p231, %p232
      %p234 = scmp.ne.s32.totalorder %s220, %s221
      %p235 = scmp.eq.s32.totalorder %s31, 1
      %p236 = por %p234, %p235
      %p238 = scmp.ne.s32.totalorder %s221, %s237
      %p239 = scmp.eq.s32.totalorder %s31, 0
      %p240 = por %p238, %p239
      %p241 = scmp.le.s32.totalorder 1, %s25
      %p242 = scmp.lt.s32.totalorder %s25, 3
      %p243 = pnand %p241, %p242
      %p244 = pneg %p243
      // Predicated region
      $region9: #{tpu_custom_call.1} parent=5 // pred_check
        _
      $region10: #{tpu_custom_call.1} parent=5 // pred_check_branch
        %246 = sbr.rel (%p243) target = $region12
      $region11: #{tpu_custom_call.1} parent=5 // pred_region
        %s247 = ssub.s32 %s25, 1
      $region12: #{tpu_custom_call.1} parent=5 // pred_fallthru
        _
      %p248 = scmp.lt.s32.totalorder %s25, 2
      // Predicated region
      $region13: #{tpu_custom_call.1} parent=5 // pred_check
        %p249 = pneg %p248
      $region14: #{tpu_custom_call.1} parent=5 // pred_check_branch
        %251 = sbr.rel (%p249) target = $region16
      $region15: #{tpu_custom_call.1} parent=5 // pred_region
        // Predicated region
        $region17: #{tpu_custom_call.1} parent=15 // pred_check
          %p252 = pneg %p59
        $region18: #{tpu_custom_call.1} parent=15 // pred_check_branch
          %254 = sbr.rel (%p252) target = $region20
        $region19: #{tpu_custom_call.1} parent=15 // pred_region
          %s255 = sand.u32 %s49, 1
          %s256 = scalar_lea.sflag [#allocation3], %s255
          %s257 = sand.u32 %s49, 1
          %s258 = smul.addr %s257, 16
          %s259 = scalar_lea.vmem [#allocation2], %s258
          %s260 = smul.u32 8, %s33
          %s262 = ssub.s32 256, 256
          %263 = vsyncadd %s256, %s262
          %s264 = smul.addr %s32, 16
          %s265 = sadd.s32 %s260, %s264
          %s266 = smul.addr %s265, 32
          %s267 = scalar_lea.hbm %s0, %s266
          %s269 = sshll.u32 %s259, 4
          %s270 = int_to_ptr.vmem [resolvable:$true] %s269
          %272 = dma.hbm_to_vmem [thread:$0]  %s267, 256, %s270, %s256
        $region20: #{tpu_custom_call.1} parent=15 // pred_fallthru
          _
        // Predicated region
        $region21: #{tpu_custom_call.1} parent=15 // pred_check
          %p273 = pneg %p87
        $region22: #{tpu_custom_call.1} parent=15 // pred_check_branch
          %275 = sbr.rel (%p273) target = $region24
        $region23: #{tpu_custom_call.1} parent=15 // pred_region
          %s276 = sand.u32 %s25, 1
          %s277 = scalar_lea.sflag [#allocation6], %s276
          %s278 = sand.u32 %s77, 1
          %s279 = smul.addr %s278, 16
          %s280 = scalar_lea.vmem [#allocation5], %s279
          %s281 = smul.u32 8, %s33
          %s283 = ssub.s32 256, 256
          %284 = vsyncadd %s277, %s283
          %s285 = smul.addr %s32, 16
          %s286 = sadd.s32 %s281, %s285
          %s287 = smul.addr %s286, 32
          %s288 = scalar_lea.hbm %s1, %s287
          %s290 = sshll.u32 %s280, 4
          %s291 = int_to_ptr.vmem [resolvable:$true] %s290
          %293 = dma.hbm_to_vmem [thread:$0]  %s288, 256, %s291, %s277
        $region24: #{tpu_custom_call.1} parent=15 // pred_fallthru
          _
        // Predicated region
        $region25: #{tpu_custom_call.1} parent=15 // pred_check
          %p294 = pneg %p115
        $region26: #{tpu_custom_call.1} parent=15 // pred_check_branch
          %296 = sbr.rel (%p294) target = $region28
        $region27: #{tpu_custom_call.1} parent=15 // pred_region
          %s297 = sand.u32 %s25, 1
          %s298 = scalar_lea.sflag [#allocation6], %s297
          %s299 = sand.u32 %s105, 1
          %s300 = smul.addr %s299, 16
          %s301 = scalar_lea.vmem [#allocation7], %s300
          %s302 = smul.u32 8, %s33
          %s304 = ssub.s32 256, 256
          %305 = vsyncadd %s298, %s304
          %s306 = smul.addr %s32, 16
          %s307 = sadd.s32 %s302, %s306
          %s308 = smul.addr %s307, 32
          %s309 = scalar_lea.hbm %s2, %s308
          %s311 = sshll.u32 %s301, 4
          %s312 = int_to_ptr.vmem [resolvable:$true] %s311
          %314 = dma.hbm_to_vmem [thread:$0]  %s309, 256, %s312, %s298
        $region28: #{tpu_custom_call.1} parent=15 // pred_fallthru
          _
        // Predicated region
        $region29: #{tpu_custom_call.1} parent=15 // pred_check
          %p315 = pneg %p143
        $region30: #{tpu_custom_call.1} parent=15 // pred_check_branch
          %317 = sbr.rel (%p315) target = $region32
        $region31: #{tpu_custom_call.1} parent=15 // pred_region
          %s318 = sand.u32 %s25, 1
          %s319 = scalar_lea.sflag [#allocation9], %s318
          %s320 = sand.u32 %s133, 1
          %s321 = smul.addr %s320, 16
          %s322 = scalar_lea.vmem [#allocation8], %s321
          %s323 = smul.u32 8, %s33
          %s325 = ssub.s32 256, 256
          %326 = vsyncadd %s319, %s325
          %s327 = smul.addr %s32, 16
          %s328 = sadd.s32 %s323, %s327
          %s329 = smul.addr %s328, 32
          %s330 = scalar_lea.hbm %s3, %s329
          %s332 = sshll.u32 %s322, 4
          %s333 = int_to_ptr.vmem [resolvable:$true] %s332
          %335 = dma.hbm_to_vmem [thread:$0]  %s330, 256, %s333, %s319
        $region32: #{tpu_custom_call.1} parent=15 // pred_fallthru
          _
        // Predicated region
        $region33: #{tpu_custom_call.1} parent=15 // pred_check
          %p336 = pneg %p171
        $region34: #{tpu_custom_call.1} parent=15 // pred_check_branch
          %338 = sbr.rel (%p336) target = $region36
        $region35: #{tpu_custom_call.1} parent=15 // pred_region
          %s339 = sand.u32 %s25, 1
          %s340 = scalar_lea.sflag [#allocation9], %s339
          %s341 = sand.u32 %s161, 1
          %s342 = smul.addr %s341, 16
          %s343 = scalar_lea.vmem [#allocation10], %s342
          %s344 = smul.u32 8, %s33
          %s346 = ssub.s32 256, 256
          %347 = vsyncadd %s340, %s346
          %s348 = smul.addr %s32, 16
          %s349 = sadd.s32 %s344, %s348
          %s350 = smul.addr %s349, 32
          %s351 = scalar_lea.hbm %s4, %s350
          %s353 = sshll.u32 %s343, 4
          %s354 = int_to_ptr.vmem [resolvable:$true] %s353
          %356 = dma.hbm_to_vmem [thread:$0]  %s351, 256, %s354, %s340
        $region36: #{tpu_custom_call.1} parent=15 // pred_fallthru
          _
      $region16: #{tpu_custom_call.1} parent=5 // pred_fallthru
        _
      %p357 = scmp.le.s32.totalorder 1, %s25
      %p358 = scmp.lt.s32.totalorder %s25, 3
      %p359 = pnand %p357, %p358
      %p360 = pneg %p359
      // Predicated region
      $region37: #{tpu_custom_call.1} parent=5 // pred_check
        _
      $region38: #{tpu_custom_call.1} parent=5 // pred_check_branch
        %362 = sbr.rel (%p359) target = $region40
      $region39: #{tpu_custom_call.1} parent=5 // pred_region
        %s363 = ssub.s32 %s25, 1
        %s364 = sand.u32 %s52, 1
        %s365 = scalar_lea.sflag [#allocation3], %s364
        %s366 = sand.u32 %s52, 1
        %s367 = smul.addr %s366, 16
        %s368 = scalar_lea.vmem [#allocation2], %s367
        // Predicated region
        $region41: #{tpu_custom_call.1} parent=39 // pred_check
          %p369 = pneg %p65
        $region42: #{tpu_custom_call.1} parent=39 // pred_check_branch
          %371 = sbr.rel (%p369) target = $region44
        $region43: #{tpu_custom_call.1} parent=39 // pred_region
          %372 = dma.done %s365, 256
        $region44: #{tpu_custom_call.1} parent=39 // pred_fallthru
          _
        %s373 = sand.u32 %s30, 1
        %s374 = scalar_lea.sflag [#allocation6], %s373
        %s375 = sand.u32 %s80, 1
        %s376 = smul.addr %s375, 16
        %s377 = scalar_lea.vmem [#allocation5], %s376
        // Predicated region
        $region45: #{tpu_custom_call.1} parent=39 // pred_check
          %p378 = pneg %p93
        $region46: #{tpu_custom_call.1} parent=39 // pred_check_branch
          %380 = sbr.rel (%p378) target = $region48
        $region47: #{tpu_custom_call.1} parent=39 // pred_region
          %381 = dma.done %s374, 256
        $region48: #{tpu_custom_call.1} parent=39 // pred_fallthru
          _
        %s382 = sand.u32 %s30, 1
        %s383 = scalar_lea.sflag [#allocation6], %s382
        %s384 = sand.u32 %s108, 1
        %s385 = smul.addr %s384, 16
        %s386 = scalar_lea.vmem [#allocation7], %s385
        // Predicated region
        $region49: #{tpu_custom_call.1} parent=39 // pred_check
          %p387 = pneg %p121
        $region50: #{tpu_custom_call.1} parent=39 // pred_check_branch
          %389 = sbr.rel (%p387) target = $region52
        $region51: #{tpu_custom_call.1} parent=39 // pred_region
          %390 = dma.done %s383, 256
        $region52: #{tpu_custom_call.1} parent=39 // pred_fallthru
          _
        %s391 = sand.u32 %s30, 1
        %s392 = scalar_lea.sflag [#allocation9], %s391
        %s393 = sand.u32 %s136, 1
        %s394 = smul.addr %s393, 16
        %s395 = scalar_lea.vmem [#allocation8], %s394
        // Predicated region
        $region53: #{tpu_custom_call.1} parent=39 // pred_check
          %p396 = pneg %p149
        $region54: #{tpu_custom_call.1} parent=39 // pred_check_branch
          %398 = sbr.rel (%p396) target = $region56
        $region55: #{tpu_custom_call.1} parent=39 // pred_region
          %399 = dma.done %s392, 256
        $region56: #{tpu_custom_call.1} parent=39 // pred_fallthru
          _
        %s400 = sand.u32 %s30, 1
        %s401 = scalar_lea.sflag [#allocation9], %s400
        %s402 = sand.u32 %s164, 1
        %s403 = smul.addr %s402, 16
        %s404 = scalar_lea.vmem [#allocation10], %s403
        // Predicated region
        $region57: #{tpu_custom_call.1} parent=39 // pred_check
          %p405 = pneg %p177
        $region58: #{tpu_custom_call.1} parent=39 // pred_check_branch
          %407 = sbr.rel (%p405) target = $region60
        $region59: #{tpu_custom_call.1} parent=39 // pred_region
          %408 = dma.done %s401, 256
        $region60: #{tpu_custom_call.1} parent=39 // pred_fallthru
          _
        %s409 = sand.u32 %s52, 1
        %s410 = scalar_lea.sflag [#allocation3], %s409
        %s411 = sand.u32 %s52, 1
        %s412 = smul.addr %s411, 16
        %s413 = scalar_lea.vmem [#allocation2], %s412
        %p414 = pneg %p65
        %p415 = pneg %p62
        %s416 = sand.u32 %s30, 1
        %s417 = scalar_lea.sflag [#allocation6], %s416
        %s418 = sand.u32 %s80, 1
        %s419 = smul.addr %s418, 16
        %s420 = scalar_lea.vmem [#allocation5], %s419
        %p421 = pneg %p93
        %p422 = pneg %p90
        %s423 = sand.u32 %s30, 1
        %s424 = scalar_lea.sflag [#allocation6], %s423
        %s425 = sand.u32 %s108, 1
        %s426 = smul.addr %s425, 16
        %s427 = scalar_lea.vmem [#allocation7], %s426
        %p428 = pneg %p121
        %p429 = pneg %p118
        %s430 = sand.u32 %s30, 1
        %s431 = scalar_lea.sflag [#allocation9], %s430
        %s432 = sand.u32 %s136, 1
        %s433 = smul.addr %s432, 16
        %s434 = scalar_lea.vmem [#allocation8], %s433
        %p435 = pneg %p149
        %p436 = pneg %p146
        %s437 = sand.u32 %s30, 1
        %s438 = scalar_lea.sflag [#allocation9], %s437
        %s439 = sand.u32 %s164, 1
        %s440 = smul.addr %s439, 16
        %s441 = scalar_lea.vmem [#allocation10], %s440
        %p442 = pneg %p177
        %p443 = pneg %p174
        %p444 = pneg %p205
        %p445 = pneg %p202
        %s446 = sand.u32 %s192, 1
        %s447 = sand.u32 %s192, 1
        %s448 = smul.addr %s447, 64
        %s449 = scalar_lea.vmem [#allocation11], %s448
        %p450 = pneg %p233
        %p451 = pneg %p230
        %s452 = sand.u32 %s220, 1
        %s453 = scalar_lea.sflag [#allocation4], %s452
        %s454 = sand.u32 %s220, 1
        %s455 = smul.addr %s454, 32
        %s456 = scalar_lea.vmem [#allocation12], %s455
        %s457 = smul.u32 8, %s35
        %s458 = smul.u32 8, %s35
        %s459 = smul.u32 8, %s35
        %s460 = smul.u32 8, %s35
        %s461 = smul.u32 8, %s35
        %s462 = smul.u32 2, %s34
        %s463 = smul.u32 8, %s35
        %s464 = smul.u32 2, %s34
        %s465 = smul.u32 8, %s35
        %v466 = vld [vmem:[%s368] sm:$0xff]
        %v467 = vld [vmem:[%s368 + $0x8] sm:$0xff]
        %v471 = vunpack.c.l.s4 1966171168
        %v472 = vunpack.c.0.s8 %v471
        %v473 = vlaneseq
        %v474 = vshrl.u32 %v473, 7
        %v475 = vsub.s32 %v472, %v474
        %v476 = vrot.slane %v466, %v475
        %v478 = vunpack.c.l.s4 1966171168
        %v479 = vunpack.c.0.s8 %v478
        %v480 = vlaneseq
        %v481 = vshrl.u32 %v480, 7
        %v482 = vsub.s32 %v479, %v481
        %v483 = vrot.slane %v467, %v482
        %v484 = vcombine.low %v476, %v483
        %v485 = vcombine.high %v476, %v483
        %488 = vst [vmem:[%s449] ss:$4 sm:$0xff] %v484
        %s489 = scalar_lea.vmem %s449, 32 [#allocation11]
        %490 = vst [vmem:[%s489] ss:$4 sm:$0xff] %v485
        %v491 = vld [vmem:[%s377] sm:$0xff]
        %v492 = vld [vmem:[%s377 + $0x8] sm:$0xff]
        %v496 = vunpack.c.l.s4 1966171168
        %v497 = vunpack.c.0.s8 %v496
        %v498 = vlaneseq
        %v499 = vshrl.u32 %v498, 7
        %v500 = vsub.s32 %v497, %v499
        %v501 = vrot.slane %v491, %v500
        %v503 = vunpack.c.l.s4 1966171168
        %v504 = vunpack.c.0.s8 %v503
        %v505 = vlaneseq
        %v506 = vshrl.u32 %v505, 7
        %v507 = vsub.s32 %v504, %v506
        %v508 = vrot.slane %v492, %v507
        %v509 = vcombine.low %v501, %v508
        %v510 = vcombine.high %v501, %v508
        %s513 = scalar_lea.vmem %s449, 1 [#allocation11]
        %514 = vst [vmem:[%s513] ss:$4 sm:$0xff] %v509
        %s515 = scalar_lea.vmem %s449, 33 [#allocation11]
        %516 = vst [vmem:[%s515] ss:$4 sm:$0xff] %v510
        %v517 = vld [vmem:[%s386] sm:$0xff]
        %v518 = vld [vmem:[%s386 + $0x8] sm:$0xff]
        %v522 = vunpack.c.l.s4 1966171168
        %v523 = vunpack.c.0.s8 %v522
        %v524 = vlaneseq
        %v525 = vshrl.u32 %v524, 7
        %v526 = vsub.s32 %v523, %v525
        %v527 = vrot.slane %v517, %v526
        %v529 = vunpack.c.l.s4 1966171168
        %v530 = vunpack.c.0.s8 %v529
        %v531 = vlaneseq
        %v532 = vshrl.u32 %v531, 7
        %v533 = vsub.s32 %v530, %v532
        %v534 = vrot.slane %v518, %v533
        %v535 = vcombine.low %v527, %v534
        %v536 = vcombine.high %v527, %v534
        %s539 = scalar_lea.vmem %s449, 2 [#allocation11]
        %540 = vst [vmem:[%s539] ss:$4 sm:$0xff] %v535
        %s541 = scalar_lea.vmem %s449, 34 [#allocation11]
        %542 = vst [vmem:[%s541] ss:$4 sm:$0xff] %v536
        %v543 = vld [vmem:[%s395] sm:$0xff]
        %v544 = vld [vmem:[%s395 + $0x8] sm:$0xff]
        %v548 = vunpack.c.l.s4 1966171168
        %v549 = vunpack.c.0.s8 %v548
        %v550 = vlaneseq
        %v551 = vshrl.u32 %v550, 7
        %v552 = vsub.s32 %v549, %v551
        %v553 = vrot.slane %v543, %v552
        %v555 = vunpack.c.l.s4 1966171168
        %v556 = vunpack.c.0.s8 %v555
        %v557 = vlaneseq
        %v558 = vshrl.u32 %v557, 7
        %v559 = vsub.s32 %v556, %v558
        %v560 = vrot.slane %v544, %v559
        %v561 = vcombine.low %v553, %v560
        %v562 = vcombine.high %v553, %v560
        %565 = vst [vmem:[%s456] ss:$2 sm:$0xff] %v561
        %s566 = scalar_lea.vmem %s456, 16 [#allocation12]
        %567 = vst [vmem:[%s566] ss:$2 sm:$0xff] %v562
        %v568 = vld [vmem:[%s404] sm:$0xff]
        %v569 = vld [vmem:[%s404 + $0x8] sm:$0xff]
        %v573 = vunpack.c.l.s4 1966171168
        %v574 = vunpack.c.0.s8 %v573
        %v575 = vlaneseq
        %v576 = vshrl.u32 %v575, 7
        %v577 = vsub.s32 %v574, %v576
        %v578 = vrot.slane %v568, %v577
        %v580 = vunpack.c.l.s4 1966171168
        %v581 = vunpack.c.0.s8 %v580
        %v582 = vlaneseq
        %v583 = vshrl.u32 %v582, 7
        %v584 = vsub.s32 %v581, %v583
        %v585 = vrot.slane %v569, %v584
        %v586 = vcombine.low %v578, %v585
        %v587 = vcombine.high %v578, %v585
        %s590 = scalar_lea.vmem %s456, 1 [#allocation12]
        %591 = vst [vmem:[%s590] ss:$2 sm:$0xff] %v586
        %s592 = scalar_lea.vmem %s456, 17 [#allocation12]
        %593 = vst [vmem:[%s592] ss:$2 sm:$0xff] %v587
        %s594 = sand.u32 %s192, 1
        %s595 = sand.u32 %s192, 1
        %s596 = smul.addr %s595, 64
        %s597 = scalar_lea.vmem [#allocation11], %s596
        %s598 = sand.u32 %s220, 1
        %s599 = scalar_lea.sflag [#allocation4], %s598
        %s600 = sand.u32 %s220, 1
        %s601 = smul.addr %s600, 32
        %s602 = scalar_lea.vmem [#allocation12], %s601
        // Predicated region
        $region61: #{tpu_custom_call.1} parent=39 // pred_check
          %p603 = pneg %p202
        $region62: #{tpu_custom_call.1} parent=39 // pred_check_branch
          %605 = sbr.rel (%p603) target = $region64
        $region63: #{tpu_custom_call.1} parent=39 // pred_region
          %s606 = smul.u32 2, %s34
          %s607 = smul.u32 8, %s35
          %s608 = smul.addr %s606, 16
          %s609 = sadd.s32 %s607, %s608
          %s610 = smul.addr %s609, 4
          %s611 = scalar_lea.vmem %s5, %s610
          // Predicated region
          $region65: #{tpu_custom_call.1} parent=63 // pred_check
            _
          $region66: #{tpu_custom_call.1} parent=63 // pred_check_branch
            %613 = sbr.rel (0) target = $region68
          $region67: #{tpu_custom_call.1} parent=63 // pred_region
            // Predicated region
            $region69: #{tpu_custom_call.1} parent=67 // pred_check
              _
            $region70: #{tpu_custom_call.1} parent=67 // pred_check_branch
              %615 = sbr.rel (0) target = $region72
            $region71: #{tpu_custom_call.1} parent=67 // pred_region
              loop: start=0, step=1, limit=1
              $region73: #{tpu_custom_call.1} parent=71 // loop_pre_header
                _
              $region74: #{tpu_custom_call.1} parent=71 // loop_header
                %s617 = sphi 0, %s621
                %p618 = scmp.ge.s32.totalorder %s617, 1
                %s622 = sphi %s597, %s597
                %s623 = sphi %s611, %s611
              $region75: #{tpu_custom_call.1} parent=71 // loop_header_branch
                %620 = sbr.rel (%p618) target = $region79
              $region76: #{tpu_custom_call.1} parent=71 // loop_body
                %v624 = vld [vmem:[%s622] sm:$0xff]
                %625 = vst [vmem:[%s623] sm:$0xff] %v624
                %v626 = vld [vmem:[%s622 + $0x8] sm:$0xff]
                %627 = vst [vmem:[%s623 + $0x8] sm:$0xff] %v626
                %v628 = vld [vmem:[%s622 + $0x10] sm:$0xff]
                %629 = vst [vmem:[%s623 + $0x10] sm:$0xff] %v628
                %v630 = vld [vmem:[%s622 + $0x18] sm:$0xff]
                %631 = vst [vmem:[%s623 + $0x18] sm:$0xff] %v630
                %v632 = vld [vmem:[%s622 + $0x20] sm:$0xff]
                %633 = vst [vmem:[%s623 + $0x40] sm:$0xff] %v632
                %v634 = vld [vmem:[%s622 + $0x28] sm:$0xff]
                %635 = vst [vmem:[%s623 + $0x48] sm:$0xff] %v634
                %v636 = vld [vmem:[%s622 + $0x30] sm:$0xff]
                %637 = vst [vmem:[%s623 + $0x50] sm:$0xff] %v636
                %v638 = vld [vmem:[%s622 + $0x38] sm:$0xff]
                %639 = vst [vmem:[%s623 + $0x58] sm:$0xff] %v638
              $region77: #{tpu_custom_call.1} parent=71 // loop_footer
                %s621 = sadd.s32 1, %s617
              $region78: #{tpu_custom_call.1} parent=71 // loop_footer_branch
                %616 = sbr.rel target = $region74
              $region79: #{tpu_custom_call.1} parent=71 // loop_exit
                _
            $region72: #{tpu_custom_call.1} parent=67 // pred_fallthru
              _
            // Predicated region
            $region80: #{tpu_custom_call.1} parent=67 // pred_check
              _
            $region81: #{tpu_custom_call.1} parent=67 // pred_check_branch
              %641 = sbr.rel target = $region83
            $region82: #{tpu_custom_call.1} parent=67 // pred_region
              _
            $region83: #{tpu_custom_call.1} parent=67 // pred_fallthru
              _
          $region68: #{tpu_custom_call.1} parent=63 // pred_fallthru
            _
          %642 = vnop
        $region64: #{tpu_custom_call.1} parent=39 // pred_fallthru
          _
        // Predicated region
        $region84: #{tpu_custom_call.1} parent=39 // pred_check
          %p643 = pneg %p230
        $region85: #{tpu_custom_call.1} parent=39 // pred_check_branch
          %645 = sbr.rel (%p643) target = $region87
        $region86: #{tpu_custom_call.1} parent=39 // pred_region
          %s646 = smul.u32 2, %s34
          %s647 = smul.u32 8, %s35
          %s649 = ssub.s32 512, 512
          %650 = vsyncadd %s599, %s649
          %s651 = smul.addr %s646, 16
          %s652 = sadd.s32 %s647, %s651
          %s653 = smul.addr %s652, 32
          %s654 = scalar_lea.hbm %s6, %s653
          %s655 = sshll.u32 %s602, 4
          %s656 = int_to_ptr.vmem [resolvable:$true] %s655
          %661 = dma.vmem_to_hbm [thread:$0]  %s656, 512, %s654, %s599, 256, 512, 16
        $region87: #{tpu_custom_call.1} parent=39 // pred_fallthru
          _
      $region40: #{tpu_custom_call.1} parent=5 // pred_fallthru
        _
      %p662 = scmp.le.s32.totalorder 2, %s25
      // Predicated region
      $region88: #{tpu_custom_call.1} parent=5 // pred_check
        %p663 = pneg %p662
      $region89: #{tpu_custom_call.1} parent=5 // pred_check_branch
        %665 = sbr.rel (%p663) target = $region91
      $region90: #{tpu_custom_call.1} parent=5 // pred_region
        %s666 = ssub.s32 %s25, 2
        // Predicated region
        $region92: #{tpu_custom_call.1} parent=90 // pred_check
          %p667 = pneg %p208
        $region93: #{tpu_custom_call.1} parent=90 // pred_check_branch
          %669 = sbr.rel (%p667) target = $region95
        $region94: #{tpu_custom_call.1} parent=90 // pred_region
          %s670 = sand.u32 %s193, 1
          %s671 = sand.u32 %s193, 1
          %s672 = smul.addr %s671, 64
          %s673 = scalar_lea.vmem [#allocation11], %s672
        $region95: #{tpu_custom_call.1} parent=90 // pred_fallthru
          _
        // Predicated region
        $region96: #{tpu_custom_call.1} parent=90 // pred_check
          %p674 = pneg %p236
        $region97: #{tpu_custom_call.1} parent=90 // pred_check_branch
          %676 = sbr.rel (%p674) target = $region99
        $region98: #{tpu_custom_call.1} parent=90 // pred_region
          %s677 = sand.u32 %s221, 1
          %s678 = scalar_lea.sflag [#allocation4], %s677
          %s679 = sand.u32 %s221, 1
          %s680 = smul.addr %s679, 32
          %s681 = scalar_lea.vmem [#allocation12], %s680
          %682 = dma.done %s678, 512
        $region99: #{tpu_custom_call.1} parent=90 // pred_fallthru
          _
      $region91: #{tpu_custom_call.1} parent=5 // pred_fallthru
        _
    $region6: #{tpu_custom_call.1} parent=1 // loop_footer
      %s29 = sadd.s32 1, %s25
    $region7: #{tpu_custom_call.1} parent=1 // loop_footer_branch
      %24 = sbr.rel target = $region3
    $region8: #{tpu_custom_call.1} parent=1 // loop_exit
      _
    %683 = vsyncpa [#allocation3], 1
    %s684 = scalar_lea.sflag [#allocation3], 1
    %685 = vsyncpa %s684, 1
    %686 = vsyncpa [#allocation6], 1
    %s687 = scalar_lea.sflag [#allocation6], 1
    %688 = vsyncpa %s687, 1
    %689 = vsyncpa [#allocation9], 1
    %s690 = scalar_lea.sflag [#allocation9], 1
    %691 = vsyncpa %s690, 1
    %692 = vsyncpa [#allocation4], 1
    %s693 = scalar_lea.sflag [#allocation4], 1
    %694 = vsyncpa %s693, 1

</llo_original>
